<compile_context>
chip_gen: v5e
topology: v5e:2x2
jax: 0.10.0
libtpu: 0.0.40
codegen_flags: <defaults>
</compile_context>

<pallas_src>
import math

import jax
import jax.numpy as jnp
from jax.experimental import pallas as pl
from jax.experimental.pallas import tpu as pltpu

_LANE = 128


def _round_up(x: int, m: int) -> int:
    return -(-x // m) * m


def _round_down(x: int, m: int) -> int:
    return (x // m) * m


def _logits2acc_kernel(logits_ref, labels_ref, pred_ref, corr_ref,
                       rmax_ref, rarg_ref):
    """Grid = (row_tiles, class_tiles); class axis last, 'arbitrary'.

    logits_ref : (TB, TC)   native-dtype block of padded (B_pad, C_pad) logits
    labels_ref : (1, TB)    int32 labels, lane-dense
    pred_ref   : (1, TB)    int32 argmax, written on the final class tile
    corr_ref   : (1, 128)   f32 per-row-tile correct count in lane 0
    rmax_ref   : (TB, 1)    f32 running row max   (VMEM scratch)
    rarg_ref   : (TB, 1)    int32 running argmax  (VMEM scratch)
    """
    c = pl.program_id(1)
    nc = pl.num_programs(1)

    @pl.when(c == 0)
    def _init():
        rmax_ref[...] = jnp.full(rmax_ref.shape, -jnp.inf, dtype=rmax_ref.dtype)
        rarg_ref[...] = jnp.zeros(rarg_ref.shape, dtype=rarg_ref.dtype)

    logits = logits_ref[...]                                    # (TB, TC)
    tc = logits.shape[-1]

    # Softmax is strictly monotonic -> argmax(softmax(x)) == argmax(x).
    tile_max = jnp.max(logits, axis=-1, keepdims=True)          # (TB, 1)
    lane_idx = jax.lax.broadcasted_iota(jnp.int32, logits.shape, 1)
    cand = jnp.where(logits == tile_max, lane_idx, jnp.int32(2 ** 30))
    tile_arg = jnp.min(cand, axis=-1, keepdims=True) + c * tc   # global col idx

    run_max = rmax_ref[...]
    tile_max_f = tile_max.astype(jnp.float32)
    # Strict '>' keeps the earlier (lower-index) class tile on ties, so the
    # first maximum wins, matching torch.argmax.
    # TODO(synk): NaN rows diverge from torch.argmax (NaN never compares '>').
    better = tile_max_f > run_max
    rmax_ref[...] = jnp.where(better, tile_max_f, run_max)
    rarg_ref[...] = jnp.where(better, tile_arg, rarg_ref[...])

    @pl.when(c == nc - 1)
    def _finalize():
        # Single sublane->lane relayout per row tile; outputs are lane-dense.
        y_pred = rarg_ref[...].reshape(1, -1)                   # (1, TB)
        pred_ref[...] = y_pred
        corr = (y_pred == labels_ref[...]).astype(jnp.float32)  # (1, TB)
        lane = jax.lax.broadcasted_iota(jnp.int32, corr_ref.shape, 1)
        corr_ref[...] = jnp.where(lane == 0, jnp.sum(corr), 0.0)


def _vmem_capacity_bytes() -> int:
    try:
        return int(pltpu.get_tpu_info().vmem_capacity_bytes)
    except Exception:
        return 64 * 1024 * 1024  # conservative (v7x per-TC) fallback


def _pick_tiles(n_rows: int, n_cols: int, itemsize: int,
                tile_budget_bytes=None):
    """Pick (TB, TC, B_pad, C_pad, vmem_cap).

    One logits tile targets ~vmem_cap/12 bytes so that the double-buffered
    input plus the int32 iota/candidate temporaries of the argmax stay well
    inside the per-generation VMEM limit (128 MiB on v5e/v6e, 64 MiB on v7x).
    """
    vmem_cap = _vmem_capacity_bytes()
    if tile_budget_bytes is None:
        tile_budget_bytes = vmem_cap // 12
    tile_budget_bytes = max(tile_budget_bytes, _LANE * _LANE * itemsize)

    c128 = _round_up(max(n_cols, 1), _LANE)
    max_tc = max(_LANE, _round_down(tile_budget_bytes // (_LANE * itemsize), _LANE))
    tc = c128 if c128 <= max_tc else max_tc
    c_pad = _round_up(max(n_cols, 1), tc)

    b128 = _round_up(max(n_rows, 1), _LANE)
    tb = max(_LANE, _round_down(tile_budget_bytes // (tc * itemsize), _LANE))
    tb = min(tb, b128)
    if b128 >= 2 * _LANE:
        # Guarantee >=2 row tiles so the "parallel" axis can shard across both
        # TensorCores (megacore / v7x).
        tb = min(tb, max(_LANE, _round_down(b128 // 2, _LANE)))
    b_pad = _round_up(max(n_rows, 1), tb)
    return tb, tc, b_pad, c_pad, vmem_cap


def logits2acc(logits: jax.Array, labels: jax.Array, *, tile_budget_bytes=None):
    """logits: (..., C); labels: any shape flattening to the leading dims.

    Returns (acc, y_pred_flat). y_pred is int32 (torch returns int64 indices;
    int32 suffices for any realistic class count).
    """
    *lead, C = logits.shape
    B = math.prod(lead) if lead else 1
    logits2d = logits.reshape(B, C)                 # native dtype, no f32 upcast
    labels_flat = labels.reshape(-1).astype(jnp.int32)

    itemsize = logits2d.dtype.itemsize
    TB, TC, B_pad, C_pad, vmem_cap = _pick_tiles(B, C, itemsize, tile_budget_bytes)
    nr, nc = B_pad // TB, C_pad // TC

    if C_pad != C:
        # Padded classes get -inf so they can never win the argmax.
        logits2d = jnp.pad(logits2d, ((0, 0), (0, C_pad - C)),
                           constant_values=-jnp.inf)
    if B_pad != B:
        logits2d = jnp.pad(logits2d, ((0, B_pad - B), (0, 0)))
        labels_flat = jnp.pad(labels_flat, (0, B_pad - B), constant_values=-1)
    labels_row = labels_flat.reshape(1, B_pad)

    cost = pl.CostEstimate(
        flops=4 * B_pad * C_pad,
        transcendentals=0,
        bytes_accessed=B_pad * C_pad * itemsize + 8 * B_pad + 4 * nr * _LANE,
    )

    pred, corr = pl.pallas_call(
        _logits2acc_kernel,
        out_shape=(
            jax.ShapeDtypeStruct((1, B_pad), jnp.int32),         # y_pred
            jax.ShapeDtypeStruct((1, nr * _LANE), jnp.float32),  # partial sums
        ),
        grid_spec=pltpu.PrefetchScalarGridSpec(
            num_scalar_prefetch=0,
            grid=(nr, nc),
            in_specs=[
                pl.BlockSpec((TB, TC), lambda i, c: (i, c)),
                pl.BlockSpec((1, TB), lambda i, c: (0, i)),
            ],
            out_specs=(
                pl.BlockSpec((1, TB), lambda i, c: (0, i)),
                pl.BlockSpec((1, _LANE), lambda i, c: (0, i)),
            ),
            scratch_shapes=[
                pltpu.VMEM((TB, 1), jnp.float32),   # running row max
                pltpu.VMEM((TB, 1), jnp.int32),     # running row argmax
            ],
        ),
        compiler_params=pltpu.CompilerParams(
            dimension_semantics=("parallel", "arbitrary"),
            vmem_limit_bytes=int(vmem_cap * 3 // 4),
        ),
        cost_estimate=cost,
    )(logits2d, labels_row)

    acc = jnp.sum(corr)                    # padded rows / lanes contribute 0
    return acc, pred.reshape(-1)[:B]


def _reference(logits, labels):
    ref_pred = jnp.argmax(jax.nn.softmax(logits.reshape(-1, logits.shape[-1]),
                                         axis=-1), axis=-1).astype(jnp.int32)
    ref_acc = jnp.sum((ref_pred == labels.reshape(-1).astype(jnp.int32))
                      .astype(jnp.float32))
    return ref_acc, ref_pred


if __name__ == "__main__":
    key = jax.random.PRNGKey(0)

    # Case 1: small single-tile case (matches the module's typical use).
    k1, k2, k3, k4, k5, k6 = jax.random.split(key, 6)
    B, C = 8, 16
    logits = jax.random.normal(k1, (B, C), dtype=jnp.float32)
    labels = jax.random.randint(k2, (B,), 0, C, dtype=jnp.int32)
    acc, y_pred = logits2acc(logits, labels)
    acc = jax.block_until_ready(acc)
    y_pred = jax.block_until_ready(y_pred)
    ref_acc, ref_pred = _reference(logits, labels)
    assert bool(jnp.all(y_pred == ref_pred)), (y_pred, ref_pred)
    assert bool(jnp.allclose(acc, ref_acc)), (acc, ref_acc)

    # Case 2: multiple row tiles + row padding (exercises the parallel axis).
    B2, C2 = 260, 8
    logits2 = jax.random.normal(k3, (B2, C2), dtype=jnp.float32)
    labels2 = jax.random.randint(k4, (B2,), 0, C2, dtype=jnp.int32)
    acc2, pred2 = logits2acc(logits2, labels2)
    jax.block_until_ready((acc2, pred2))
    ref_acc2, ref_pred2 = _reference(logits2, labels2)
    assert bool(jnp.all(pred2 == ref_pred2))
    assert bool(jnp.allclose(acc2, ref_acc2))

    # Case 3: force class-axis tiling (3 class tiles) via a tiny tile budget
    # to exercise the running-max/argmax accumulator path.
    B3, C3 = 16, 300
    logits3 = jax.random.normal(k5, (B3, C3), dtype=jnp.float32)
    labels3 = jax.random.randint(k6, (B3,), 0, C3, dtype=jnp.int32)
    acc3, pred3 = logits2acc(logits3, labels3,
                             tile_budget_bytes=_LANE * _LANE * 4)
    jax.block_until_ready((acc3, pred3))
    ref_acc3, ref_pred3 = _reference(logits3, labels3)
    assert bool(jnp.all(pred3 == ref_pred3))
    assert bool(jnp.allclose(acc3, ref_acc3))

    print("KERNEL_OK")
</pallas_src>

<mosaic_0001>
module attributes {stable_mosaic.version = 11 : i64} {
  func.func @_logits2acc_kernel(%arg0: i32, %arg1: i32, %arg2: memref<128x128xf32, #tpu.memory_space<vmem>>, %arg3: memref<1x128xi32, #tpu.memory_space<vmem>>, %arg4: memref<1x128xi32, #tpu.memory_space<vmem>>, %arg5: memref<1x128xf32, #tpu.memory_space<vmem>>, %arg6: memref<128x1xf32, #tpu.memory_space<vmem>>, %arg7: memref<128x1xi32, #tpu.memory_space<vmem>>) attributes {dimension_semantics = [#tpu.dimension_semantics<parallel>, #tpu.dimension_semantics<arbitrary>], iteration_bounds = array<i64: 1, 1>, scalar_prefetch = 0 : i64, scratch_operands = 2 : i64, tpu.core_type = #tpu.core_type<tc>, window_params = [{transform_indices = @transform_0, window_bounds = array<i64: 128, 128>}, {transform_indices = @transform_1, window_bounds = array<i64: 1, 128>}, {transform_indices = @transform_2, window_bounds = array<i64: 1, 128>}, {transform_indices = @transform_3, window_bounds = array<i64: 1, 128>}]} {
    %c0_i32 = arith.constant 0 : i32
    %0 = arith.cmpi eq, %arg1, %c0_i32 : i32
    %1 = arith.extui %0 : i1 to i32
    %c0_i32_0 = arith.constant 0 : i32
    %2 = arith.cmpi ne, %1, %c0_i32_0 : i32
    scf.if %2 {
      %cst_13 = arith.constant 0xFF800000 : f32
      %26 = vector.broadcast %cst_13 : f32 to vector<128x1xf32>
      %c0_14 = arith.constant 0 : index
      %c0_15 = arith.constant 0 : index
      %27 = vector.load %arg6[%c0_14, %c0_15] : memref<128x1xf32, #tpu.memory_space<vmem>>, vector<128x1xf32>
      tpu.vector_store %arg6[%c0_14, %c0_15], %26 {strides = array<i32>} : memref<128x1xf32, #tpu.memory_space<vmem>>, vector<128x1xf32>,
      %c0_i32_16 = arith.constant 0 : i32
      %28 = vector.broadcast %c0_i32_16 : i32 to vector<128x1xi32>
      %c0_17 = arith.constant 0 : index
      %c0_18 = arith.constant 0 : index
      %29 = vector.load %arg7[%c0_17, %c0_18] : memref<128x1xi32, #tpu.memory_space<vmem>>, vector<128x1xi32>
      tpu.vector_store %arg7[%c0_17, %c0_18], %28 {strides = array<i32>} : memref<128x1xi32, #tpu.memory_space<vmem>>, vector<128x1xi32>,
    } else {
    }
    %c0 = arith.constant 0 : index
    %c0_1 = arith.constant 0 : index
    %3 = vector.load %arg2[%c0, %c0_1] : memref<128x128xf32, #tpu.memory_space<vmem>>, vector<128x128xf32>
    %cst = arith.constant dense<0xFF800000> : vector<128xf32>
    %4 = vector.multi_reduction <maximumf>, %3, %cst [1] : vector<128x128xf32> to vector<128xf32>
    %5 = vector.shape_cast %4 : vector<128xf32> to vector<128x1xf32>
    %6 = tpu.iota {dimensions = array<i32: 1>} : vector<128x128xi32>
    %7 = vector.broadcast %5 : vector<128x1xf32> to vector<128x128xf32>
    %8 = arith.cmpf oeq, %3, %7 : vector<128x128xf32>
    %c1073741824_i32 = arith.constant 1073741824 : i32
    %9 = vector.broadcast %c1073741824_i32 : i32 to vector<128x128xi32>
    %10 = arith.select %8, %6, %9 : vector<128x128xi1>, vector<128x128xi32>
    %cst_2 = arith.constant dense<2147483647> : vector<128xi32>
    %11 = vector.multi_reduction <minsi>, %10, %cst_2 [1] : vector<128x128xi32> to vector<128xi32>
    %12 = vector.shape_cast %11 : vector<128xi32> to vector<128x1xi32>
    %c128_i32 = arith.constant 128 : i32
    %13 = arith.muli %arg1, %c128_i32 : i32
    %14 = vector.broadcast %13 : i32 to vector<128x1xi32>
    %15 = arith.addi %12, %14 : vector<128x1xi32>
    %c0_3 = arith.constant 0 : index
    %c0_4 = arith.constant 0 : index
    %16 = vector.load %arg6[%c0_3, %c0_4] : memref<128x1xf32, #tpu.memory_space<vmem>>, vector<128x1xf32>
    %17 = arith.cmpf ogt, %5, %16 : vector<128x1xf32>
    %18 = arith.select %17, %5, %16 : vector<128x1xi1>, vector<128x1xf32>
    %c0_5 = arith.constant 0 : index
    %c0_6 = arith.constant 0 : index
    %19 = vector.load %arg6[%c0_5, %c0_6] : memref<128x1xf32, #tpu.memory_space<vmem>>, vector<128x1xf32>
    tpu.vector_store %arg6[%c0_5, %c0_6], %18 {strides = array<i32>} : memref<128x1xf32, #tpu.memory_space<vmem>>, vector<128x1xf32>,
    %c0_7 = arith.constant 0 : index
    %c0_8 = arith.constant 0 : index
    %20 = vector.load %arg7[%c0_7, %c0_8] : memref<128x1xi32, #tpu.memory_space<vmem>>, vector<128x1xi32>
    %21 = arith.select %17, %15, %20 : vector<128x1xi1>, vector<128x1xi32>
    %c0_9 = arith.constant 0 : index
    %c0_10 = arith.constant 0 : index
    %22 = vector.load %arg7[%c0_9, %c0_10] : memref<128x1xi32, #tpu.memory_space<vmem>>, vector<128x1xi32>
    tpu.vector_store %arg7[%c0_9, %c0_10], %21 {strides = array<i32>} : memref<128x1xi32, #tpu.memory_space<vmem>>, vector<128x1xi32>,
    %c0_i32_11 = arith.constant 0 : i32
    %23 = arith.cmpi eq, %arg1, %c0_i32_11 : i32
    %24 = arith.extui %23 : i1 to i32
    %c0_i32_12 = arith.constant 0 : i32
    %25 = arith.cmpi ne, %24, %c0_i32_12 : i32
    scf.if %25 {
      %c0_13 = arith.constant 0 : index
      %c0_14 = arith.constant 0 : index
      %26 = vector.load %arg7[%c0_13, %c0_14] : memref<128x1xi32, #tpu.memory_space<vmem>>, vector<128x1xi32>
      %27 = vector.shape_cast %26 : vector<128x1xi32> to vector<1x128xi32>
      %c0_15 = arith.constant 0 : index
      %c0_16 = arith.constant 0 : index
      %28 = vector.load %arg4[%c0_15, %c0_16] : memref<1x128xi32, #tpu.memory_space<vmem>>, vector<1x128xi32>
      tpu.vector_store %arg4[%c0_15, %c0_16], %27 {strides = array<i32>} : memref<1x128xi32, #tpu.memory_space<vmem>>, vector<1x128xi32>,
      %c0_17 = arith.constant 0 : index
      %c0_18 = arith.constant 0 : index
      %29 = vector.load %arg3[%c0_17, %c0_18] : memref<1x128xi32, #tpu.memory_space<vmem>>, vector<1x128xi32>
      %30 = arith.cmpi eq, %27, %29 : vector<1x128xi32>
      %31 = arith.extui %30 : vector<1x128xi1> to vector<1x128xi32>
      %32 = arith.sitofp %31 : vector<1x128xi32> to vector<1x128xf32>
      %33 = tpu.iota {dimensions = array<i32: 1>} : vector<1x128xi32>
      %c0_i32_19 = arith.constant 0 : i32
      %34 = vector.broadcast %c0_i32_19 : i32 to vector<1x128xi32>
      %35 = arith.cmpi eq, %33, %34 : vector<1x128xi32>
      %36 = vector.shape_cast %32 : vector<1x128xf32> to vector<1x1x128xf32>
      %cst_20 = arith.constant dense<0.000000e+00> : vector<1xf32>
      %37 = vector.multi_reduction <add>, %36, %cst_20 [1, 2] : vector<1x1x128xf32> to vector<1xf32>
      %38 = vector.shape_cast %37 : vector<1xf32> to vector<1x1x1xf32>
      %39 = vector.extract %38[0, 0, 0] : f32 from vector<1x1x1xf32>
      %cst_21 = arith.constant 0.000000e+00 : f32
      %40 = vector.broadcast %39 : f32 to vector<1x128xf32>
      %41 = vector.broadcast %cst_21 : f32 to vector<1x128xf32>
      %42 = arith.select %35, %40, %41 : vector<1x128xi1>, vector<1x128xf32>
      %c0_22 = arith.constant 0 : index
      %c0_23 = arith.constant 0 : index
      %43 = vector.load %arg5[%c0_22, %c0_23] : memref<1x128xf32, #tpu.memory_space<vmem>>, vector<1x128xf32>
      tpu.vector_store %arg5[%c0_22, %c0_23], %42 {strides = array<i32>} : memref<1x128xf32, #tpu.memory_space<vmem>>, vector<1x128xf32>,
    } else {
    }
    return
  }
  func.func @transform_0(%arg0: i32, %arg1: i32) -> (i32, i32) {
    %c0_i32 = arith.constant 0 : i32
    return %arg0, %arg1 : i32, i32
  }
  func.func @transform_1(%arg0: i32, %arg1: i32) -> (i32, i32) {
    %c0_i32 = arith.constant 0 : i32
    %c0_i32_0 = arith.constant 0 : i32
    return %c0_i32, %arg0 : i32, i32
  }
  func.func @transform_2(%arg0: i32, %arg1: i32) -> (i32, i32) {
    %c0_i32 = arith.constant 0 : i32
    %c0_i32_0 = arith.constant 0 : i32
    return %c0_i32, %arg0 : i32, i32
  }
  func.func @transform_3(%arg0: i32, %arg1: i32) -> (i32, i32) {
    %c0_i32 = arith.constant 0 : i32
    %c0_i32_0 = arith.constant 0 : i32
    return %c0_i32, %arg0 : i32, i32
  }
}

</mosaic_0001>

<llo_original>
// kernel: tpu_custom_call.1
$region0: #{tpu_custom_call.1}
  #allocation0 [shape = 'u32[]', space=smem, size = 0x4, offset = 0x4, fixed_abs, tag = 'smem constant byte address 0x4 - core index']
  #allocation1 [shape = 'u32[72,128]{1,0:T(1,128)}', space=vmem, size = 0x9000, scoped, tag = 'internal scratch']
  #allocation2 [shape = 'f32[128,1]{1,0:T(8,128)}', space=vmem, size = 0x10000, scoped, tag = 'scratch operand']
  #allocation3 [shape = 's32[128,1]{1,0:T(8,128)}', space=vmem, size = 0x10000, scoped, tag = 'scratch operand']
  %s0 = inlined_call_operand.hbm [shape: f32[128,128], index: 0, kind: input, shape index: {}]
  %s1 = inlined_call_operand.hbm [shape: s32[1,128], index: 1, kind: input, shape index: {}]
  %s2 = inlined_call_operand.hbm [shape: s32[1,128], index: 2, kind: output, shape index: {0}]
  %s3 = inlined_call_operand.hbm [shape: f32[1,128], index: 3, kind: output, shape index: {1}]
  %4 = xla_tuple %s2, %s3
  %s5 = sld [smem:[#allocation0]]
  $region42: #{tpu_custom_call.1} parent=0
    _
  %s7 = ssub.s32 1, %s5
  %s8 = scalar_select 0, %s7, %s5
  $region1: #{tpu_custom_call.1} parent=0
    #allocation4 [shape = 'u8[65536]{0}', space=vmem, size = 0x10000, scoped, tag = 'input window, operand 0, single buffered']
    #allocation5 [shape = 's32[1]{0}', space=sflag, size = 0x4, scoped, tag = 'scoped memory for tpu_custom_call.1']
    #allocation6 [shape = 's32[1]{0}', space=sflag, size = 0x4, scoped, tag = 'scoped memory for tpu_custom_call.1']
    #allocation7 [shape = 'u8[512]{0}', space=vmem, size = 0x400, scoped, tag = 'input window, operand 1, single buffered']
    #allocation8 [shape = 's32[1]{0}', space=sflag, size = 0x4, scoped, tag = 'scoped memory for tpu_custom_call.1']
    #allocation9 [shape = 'u8[512]{0}', space=vmem, size = 0x400, scoped, tag = 'output window, operand 0, single buffered']
    #allocation10 [shape = 'u8[512]{0}', space=vmem, size = 0x400, scoped, tag = 'output window, operand 1, single buffered']
    #allocation11 [shape = 's32[1]{0}', space=sflag, size = 0x4, scoped, tag = 'scoped memory for tpu_custom_call.1']
    %9 = vsyncpa [#allocation5], 0
    %10 = vsyncpa [#allocation8], 0
    %11 = vsyncpa [#allocation6], 0
    %12 = vsyncpa [#allocation11], 0
    // Predicated region
    $region2: #{tpu_custom_call.1} parent=1 // pred_check
      _
    $region3: #{tpu_custom_call.1} parent=1 // pred_check_branch
      %14 = sbr.rel (0) target = $region5
    $region4: #{tpu_custom_call.1} parent=1 // pred_region
      %16 = vsyncadd [#allocation5], 0
      %s17 = sshll.u32 %s0, 4
      %s18 = int_to_ptr.hbm [resolvable:$true] %s17
      %s19 = sshll.u32 [#allocation4], 4
      %s20 = int_to_ptr.vmem [resolvable:$true] %s19
      %25 = dma.hbm_to_vmem [thread:$0]  %s18, 2048, %s20, [#allocation5], 128, 128, 8
    $region5: #{tpu_custom_call.1} parent=1 // pred_fallthru
      _
    // Predicated region
    $region6: #{tpu_custom_call.1} parent=1 // pred_check
      _
    $region7: #{tpu_custom_call.1} parent=1 // pred_check_branch
      %27 = sbr.rel (0) target = $region9
    $region8: #{tpu_custom_call.1} parent=1 // pred_region
      %29 = vsyncadd [#allocation8], 0
      %s31 = sshll.u32 %s1, 4
      %s32 = int_to_ptr.hbm [resolvable:$true] %s31
      %s33 = sshll.u32 [#allocation7], 4
      %s34 = int_to_ptr.vmem [resolvable:$true] %s33
      %36 = dma.hbm_to_vmem [thread:$0]  %s32, 16, %s34, [#allocation8]
    $region9: #{tpu_custom_call.1} parent=1 // pred_fallthru
      _
    // Predicated region
    $region10: #{tpu_custom_call.1} parent=1 // pred_check
      _
    $region11: #{tpu_custom_call.1} parent=1 // pred_check_branch
      %38 = sbr.rel (0) target = $region13
    $region12: #{tpu_custom_call.1} parent=1 // pred_region
      %40 = dma.done [#allocation5], 2048
    $region13: #{tpu_custom_call.1} parent=1 // pred_fallthru
      _
    // Predicated region
    $region14: #{tpu_custom_call.1} parent=1 // pred_check
      _
    $region15: #{tpu_custom_call.1} parent=1 // pred_check_branch
      %42 = sbr.rel (0) target = $region17
    $region16: #{tpu_custom_call.1} parent=1 // pred_region
      %44 = dma.done [#allocation8], 16
    $region17: #{tpu_custom_call.1} parent=1 // pred_fallthru
      _
    %p45 = scmp.eq.s32.totalorder 0, 0
    // Predicated region
    $region18: #{tpu_custom_call.1} parent=1 // pred_check
      %p46 = pneg %p45
    $region19: #{tpu_custom_call.1} parent=1 // pred_check_branch
      %48 = sbr.rel (%p46) target = $region21
    $region20: #{tpu_custom_call.1} parent=1 // pred_region
      %vm49 = vcmask 7168
      %50 = vst.msk [vmem:[#allocation2] sm:$0xff] %vm49, -inf
      %51 = vst.msk [vmem:[#allocation2 + $0x8] sm:$0xff] %vm49, -inf
      %52 = vst.msk [vmem:[#allocation2 + $0x10] sm:$0xff] %vm49, -inf
      %53 = vst.msk [vmem:[#allocation2 + $0x18] sm:$0xff] %vm49, -inf
      %54 = vst.msk [vmem:[#allocation2 + $0x20] sm:$0xff] %vm49, -inf
      %55 = vst.msk [vmem:[#allocation2 + $0x28] sm:$0xff] %vm49, -inf
      %56 = vst.msk [vmem:[#allocation2 + $0x30] sm:$0xff] %vm49, -inf
      %57 = vst.msk [vmem:[#allocation2 + $0x38] sm:$0xff] %vm49, -inf
      %58 = vst.msk [vmem:[#allocation2 + $0x40] sm:$0xff] %vm49, -inf
      %59 = vst.msk [vmem:[#allocation2 + $0x48] sm:$0xff] %vm49, -inf
      %60 = vst.msk [vmem:[#allocation2 + $0x50] sm:$0xff] %vm49, -inf
      %61 = vst.msk [vmem:[#allocation2 + $0x58] sm:$0xff] %vm49, -inf
      %62 = vst.msk [vmem:[#allocation2 + $0x60] sm:$0xff] %vm49, -inf
      %63 = vst.msk [vmem:[#allocation2 + $0x68] sm:$0xff] %vm49, -inf
      %64 = vst.msk [vmem:[#allocation2 + $0x70] sm:$0xff] %vm49, -inf
      %65 = vst.msk [vmem:[#allocation2 + $0x78] sm:$0xff] %vm49, -inf
      %66 = vst.msk [vmem:[#allocation3] sm:$0xff] %vm49, 0
      %67 = vst.msk [vmem:[#allocation3 + $0x8] sm:$0xff] %vm49, 0
      %68 = vst.msk [vmem:[#allocation3 + $0x10] sm:$0xff] %vm49, 0
      %69 = vst.msk [vmem:[#allocation3 + $0x18] sm:$0xff] %vm49, 0
      %70 = vst.msk [vmem:[#allocation3 + $0x20] sm:$0xff] %vm49, 0
      %71 = vst.msk [vmem:[#allocation3 + $0x28] sm:$0xff] %vm49, 0
      %72 = vst.msk [vmem:[#allocation3 + $0x30] sm:$0xff] %vm49, 0
      %73 = vst.msk [vmem:[#allocation3 + $0x38] sm:$0xff] %vm49, 0
      %74 = vst.msk [vmem:[#allocation3 + $0x40] sm:$0xff] %vm49, 0
      %75 = vst.msk [vmem:[#allocation3 + $0x48] sm:$0xff] %vm49, 0
      %76 = vst.msk [vmem:[#allocation3 + $0x50] sm:$0xff] %vm49, 0
      %77 = vst.msk [vmem:[#allocation3 + $0x58] sm:$0xff] %vm49, 0
      %78 = vst.msk [vmem:[#allocation3 + $0x60] sm:$0xff] %vm49, 0
      %79 = vst.msk [vmem:[#allocation3 + $0x68] sm:$0xff] %vm49, 0
      %80 = vst.msk [vmem:[#allocation3 + $0x70] sm:$0xff] %vm49, 0
      %81 = vst.msk [vmem:[#allocation3 + $0x78] sm:$0xff] %vm49, 0
    $region21: #{tpu_custom_call.1} parent=1 // pred_fallthru
      _
    %v82 = vld [vmem:[#allocation4] sm:$0xff]
    %v83 = vld [vmem:[#allocation4 + $0x8] sm:$0xff]
    %v84 = vld [vmem:[#allocation4 + $0x10] sm:$0xff]
    %v85 = vld [vmem:[#allocation4 + $0x18] sm:$0xff]
    %v86 = vld [vmem:[#allocation4 + $0x20] sm:$0xff]
    %v87 = vld [vmem:[#allocation4 + $0x28] sm:$0xff]
    %v88 = vld [vmem:[#allocation4 + $0x30] sm:$0xff]
    %v89 = vld [vmem:[#allocation4 + $0x38] sm:$0xff]
    %v90 = vld [vmem:[#allocation4 + $0x40] sm:$0xff]
    %v91 = vld [vmem:[#allocation4 + $0x48] sm:$0xff]
    %v92 = vld [vmem:[#allocation4 + $0x50] sm:$0xff]
    %v93 = vld [vmem:[#allocation4 + $0x58] sm:$0xff]
    %v94 = vld [vmem:[#allocation4 + $0x60] sm:$0xff]
    %v95 = vld [vmem:[#allocation4 + $0x68] sm:$0xff]
    %v96 = vld [vmem:[#allocation4 + $0x70] sm:$0xff]
    %v97 = vld [vmem:[#allocation4 + $0x78] sm:$0xff]
    %98 = vmax.xlane.f32.xlu0 %v82
    %v99 = vpop.xlane.xlu0 %98
    %100 = vmax.xlane.f32.xlu0 %v83
    %v101 = vpop.xlane.xlu0 %100
    %102 = vmax.xlane.f32.xlu0 %v84
    %v103 = vpop.xlane.xlu0 %102
    %104 = vmax.xlane.f32.xlu0 %v85
    %v105 = vpop.xlane.xlu0 %104
    %106 = vmax.xlane.f32.xlu0 %v86
    %v107 = vpop.xlane.xlu0 %106
    %108 = vmax.xlane.f32.xlu0 %v87
    %v109 = vpop.xlane.xlu0 %108
    %110 = vmax.xlane.f32.xlu0 %v88
    %v111 = vpop.xlane.xlu0 %110
    %112 = vmax.xlane.f32.xlu0 %v89
    %v113 = vpop.xlane.xlu0 %112
    %114 = vmax.xlane.f32.xlu0 %v90
    %v115 = vpop.xlane.xlu0 %114
    %116 = vmax.xlane.f32.xlu0 %v91
    %v117 = vpop.xlane.xlu0 %116
    %118 = vmax.xlane.f32.xlu0 %v92
    %v119 = vpop.xlane.xlu0 %118
    %120 = vmax.xlane.f32.xlu0 %v93
    %v121 = vpop.xlane.xlu0 %120
    %122 = vmax.xlane.f32.xlu0 %v94
    %v123 = vpop.xlane.xlu0 %122
    %124 = vmax.xlane.f32.xlu0 %v95
    %v125 = vpop.xlane.xlu0 %124
    %126 = vmax.xlane.f32.xlu0 %v96
    %v127 = vpop.xlane.xlu0 %126
    %128 = vmax.xlane.f32.xlu0 %v97
    %v129 = vpop.xlane.xlu0 %128
    %v130 = vlaneseq
    %v131 = vand.u32 %v130, 127
    %vm132 = vcmp.eq.f32.partialorder %v82, %v99
    %vm133 = vcmp.eq.f32.partialorder %v83, %v101
    %vm134 = vcmp.eq.f32.partialorder %v84, %v103
    %vm135 = vcmp.eq.f32.partialorder %v85, %v105
    %vm136 = vcmp.eq.f32.partialorder %v86, %v107
    %vm137 = vcmp.eq.f32.partialorder %v87, %v109
    %vm138 = vcmp.eq.f32.partialorder %v88, %v111
    %vm139 = vcmp.eq.f32.partialorder %v89, %v113
    %vm140 = vcmp.eq.f32.partialorder %v90, %v115
    %vm141 = vcmp.eq.f32.partialorder %v91, %v117
    %vm142 = vcmp.eq.f32.partialorder %v92, %v119
    %vm143 = vcmp.eq.f32.partialorder %v93, %v121
    %vm144 = vcmp.eq.f32.partialorder %v94, %v123
    %vm145 = vcmp.eq.f32.partialorder %v95, %v125
    %vm146 = vcmp.eq.f32.partialorder %v96, %v127
    %vm147 = vcmp.eq.f32.partialorder %v97, %v129
    %v148 = vsel %vm132, %v131, 1073741824
    %v149 = vsel %vm133, %v131, 1073741824
    %v150 = vsel %vm134, %v131, 1073741824
    %v151 = vsel %vm135, %v131, 1073741824
    %v152 = vsel %vm136, %v131, 1073741824
    %v153 = vsel %vm137, %v131, 1073741824
    %v154 = vsel %vm138, %v131, 1073741824
    %v155 = vsel %vm139, %v131, 1073741824
    %v156 = vsel %vm140, %v131, 1073741824
    %v157 = vsel %vm141, %v131, 1073741824
    %v158 = vsel %vm142, %v131, 1073741824
    %v159 = vsel %vm143, %v131, 1073741824
    %v160 = vsel %vm144, %v131, 1073741824
    %v161 = vsel %vm145, %v131, 1073741824
    %v162 = vsel %vm146, %v131, 1073741824
    %v163 = vsel %vm147, %v131, 1073741824
    %v164 = vand.u32 %v148, 65535
    %v165 = vshra.s32 %v148, 16
    %v166 = vcvt.s32.f32 %v164
    %v167 = vcvt.s32.f32 %v165
    %168 = vmin.xlane.f32.xlu0 %v167
    %v169 = vpop.xlane.xlu0 %168
    %vm170 = vcmp.eq.f32.partialorder %v167, %v169
    %v171 = vsel %vm170, %v166, inf
    %172 = vmin.xlane.f32.xlu0 %v171
    %v173 = vpop.xlane.xlu0 %172
    %v174 = vcvt.f32.s32 %v173
    %v175 = vcvt.f32.s32 %v169
    %v176 = vshll.u32 %v175, 16
    %v177 = vadd.s32 %v176, %v174
    %v178 = vand.u32 %v149, 65535
    %v179 = vshra.s32 %v149, 16
    %v180 = vcvt.s32.f32 %v178
    %v181 = vcvt.s32.f32 %v179
    %182 = vmin.xlane.f32.xlu0 %v181
    %v183 = vpop.xlane.xlu0 %182
    %vm184 = vcmp.eq.f32.partialorder %v181, %v183
    %v185 = vsel %vm184, %v180, inf
    %186 = vmin.xlane.f32.xlu0 %v185
    %v187 = vpop.xlane.xlu0 %186
    %v188 = vcvt.f32.s32 %v187
    %v189 = vcvt.f32.s32 %v183
    %v190 = vshll.u32 %v189, 16
    %v191 = vadd.s32 %v190, %v188
    %v192 = vand.u32 %v150, 65535
    %v193 = vshra.s32 %v150, 16
    %v194 = vcvt.s32.f32 %v192
    %v195 = vcvt.s32.f32 %v193
    %196 = vmin.xlane.f32.xlu0 %v195
    %v197 = vpop.xlane.xlu0 %196
    %vm198 = vcmp.eq.f32.partialorder %v195, %v197
    %v199 = vsel %vm198, %v194, inf
    %200 = vmin.xlane.f32.xlu0 %v199
    %v201 = vpop.xlane.xlu0 %200
    %v202 = vcvt.f32.s32 %v201
    %v203 = vcvt.f32.s32 %v197
    %v204 = vshll.u32 %v203, 16
    %v205 = vadd.s32 %v204, %v202
    %v206 = vand.u32 %v151, 65535
    %v207 = vshra.s32 %v151, 16
    %v208 = vcvt.s32.f32 %v206
    %v209 = vcvt.s32.f32 %v207
    %210 = vmin.xlane.f32.xlu0 %v209
    %v211 = vpop.xlane.xlu0 %210
    %vm212 = vcmp.eq.f32.partialorder %v209, %v211
    %v213 = vsel %vm212, %v208, inf
    %214 = vmin.xlane.f32.xlu0 %v213
    %v215 = vpop.xlane.xlu0 %214
    %v216 = vcvt.f32.s32 %v215
    %v217 = vcvt.f32.s32 %v211
    %v218 = vshll.u32 %v217, 16
    %v219 = vadd.s32 %v218, %v216
    %v220 = vand.u32 %v152, 65535
    %v221 = vshra.s32 %v152, 16
    %v222 = vcvt.s32.f32 %v220
    %v223 = vcvt.s32.f32 %v221
    %224 = vmin.xlane.f32.xlu0 %v223
    %v225 = vpop.xlane.xlu0 %224
    %vm226 = vcmp.eq.f32.partialorder %v223, %v225
    %v227 = vsel %vm226, %v222, inf
    %228 = vmin.xlane.f32.xlu0 %v227
    %v229 = vpop.xlane.xlu0 %228
    %v230 = vcvt.f32.s32 %v229
    %v231 = vcvt.f32.s32 %v225
    %v232 = vshll.u32 %v231, 16
    %v233 = vadd.s32 %v232, %v230
    %v234 = vand.u32 %v153, 65535
    %v235 = vshra.s32 %v153, 16
    %v236 = vcvt.s32.f32 %v234
    %v237 = vcvt.s32.f32 %v235
    %238 = vmin.xlane.f32.xlu0 %v237
    %v239 = vpop.xlane.xlu0 %238
    %vm240 = vcmp.eq.f32.partialorder %v237, %v239
    %v241 = vsel %vm240, %v236, inf
    %242 = vmin.xlane.f32.xlu0 %v241
    %v243 = vpop.xlane.xlu0 %242
    %v244 = vcvt.f32.s32 %v243
    %v245 = vcvt.f32.s32 %v239
    %v246 = vshll.u32 %v245, 16
    %v247 = vadd.s32 %v246, %v244
    %v248 = vand.u32 %v154, 65535
    %v249 = vshra.s32 %v154, 16
    %v250 = vcvt.s32.f32 %v248
    %v251 = vcvt.s32.f32 %v249
    %252 = vmin.xlane.f32.xlu0 %v251
    %v253 = vpop.xlane.xlu0 %252
    %vm254 = vcmp.eq.f32.partialorder %v251, %v253
    %v255 = vsel %vm254, %v250, inf
    %256 = vmin.xlane.f32.xlu0 %v255
    %v257 = vpop.xlane.xlu0 %256
    %v258 = vcvt.f32.s32 %v257
    %v259 = vcvt.f32.s32 %v253
    %v260 = vshll.u32 %v259, 16
    %v261 = vadd.s32 %v260, %v258
    %v262 = vand.u32 %v155, 65535
    %v263 = vshra.s32 %v155, 16
    %v264 = vcvt.s32.f32 %v262
    %v265 = vcvt.s32.f32 %v263
    %266 = vmin.xlane.f32.xlu0 %v265
    %v267 = vpop.xlane.xlu0 %266
    %vm268 = vcmp.eq.f32.partialorder %v265, %v267
    %v269 = vsel %vm268, %v264, inf
    %270 = vmin.xlane.f32.xlu0 %v269
    %v271 = vpop.xlane.xlu0 %270
    %v272 = vcvt.f32.s32 %v271
    %v273 = vcvt.f32.s32 %v267
    %v274 = vshll.u32 %v273, 16
    %v275 = vadd.s32 %v274, %v272
    %v276 = vand.u32 %v156, 65535
    %v277 = vshra.s32 %v156, 16
    %v278 = vcvt.s32.f32 %v276
    %v279 = vcvt.s32.f32 %v277
    %280 = vmin.xlane.f32.xlu0 %v279
    %v281 = vpop.xlane.xlu0 %280
    %vm282 = vcmp.eq.f32.partialorder %v279, %v281
    %v283 = vsel %vm282, %v278, inf
    %284 = vmin.xlane.f32.xlu0 %v283
    %v285 = vpop.xlane.xlu0 %284
    %v286 = vcvt.f32.s32 %v285
    %v287 = vcvt.f32.s32 %v281
    %v288 = vshll.u32 %v287, 16
    %v289 = vadd.s32 %v288, %v286
    %v290 = vand.u32 %v157, 65535
    %v291 = vshra.s32 %v157, 16
    %v292 = vcvt.s32.f32 %v290
    %v293 = vcvt.s32.f32 %v291
    %294 = vmin.xlane.f32.xlu0 %v293
    %v295 = vpop.xlane.xlu0 %294
    %vm296 = vcmp.eq.f32.partialorder %v293, %v295
    %v297 = vsel %vm296, %v292, inf
    %298 = vmin.xlane.f32.xlu0 %v297
    %v299 = vpop.xlane.xlu0 %298
    %v300 = vcvt.f32.s32 %v299
    %v301 = vcvt.f32.s32 %v295
    %v302 = vshll.u32 %v301, 16
    %v303 = vadd.s32 %v302, %v300
    %v304 = vand.u32 %v158, 65535
    %v305 = vshra.s32 %v158, 16
    %v306 = vcvt.s32.f32 %v304
    %v307 = vcvt.s32.f32 %v305
    %308 = vmin.xlane.f32.xlu0 %v307
    %v309 = vpop.xlane.xlu0 %308
    %vm310 = vcmp.eq.f32.partialorder %v307, %v309
    %v311 = vsel %vm310, %v306, inf
    %312 = vmin.xlane.f32.xlu0 %v311
    %v313 = vpop.xlane.xlu0 %312
    %v314 = vcvt.f32.s32 %v313
    %v315 = vcvt.f32.s32 %v309
    %v316 = vshll.u32 %v315, 16
    %v317 = vadd.s32 %v316, %v314
    %v318 = vand.u32 %v159, 65535
    %v319 = vshra.s32 %v159, 16
    %v320 = vcvt.s32.f32 %v318
    %v321 = vcvt.s32.f32 %v319
    %322 = vmin.xlane.f32.xlu0 %v321
    %v323 = vpop.xlane.xlu0 %322
    %vm324 = vcmp.eq.f32.partialorder %v321, %v323
    %v325 = vsel %vm324, %v320, inf
    %326 = vmin.xlane.f32.xlu0 %v325
    %v327 = vpop.xlane.xlu0 %326
    %v328 = vcvt.f32.s32 %v327
    %v329 = vcvt.f32.s32 %v323
    %v330 = vshll.u32 %v329, 16
    %v331 = vadd.s32 %v330, %v328
    %v332 = vand.u32 %v160, 65535
    %v333 = vshra.s32 %v160, 16
    %v334 = vcvt.s32.f32 %v332
    %v335 = vcvt.s32.f32 %v333
    %336 = vmin.xlane.f32.xlu0 %v335
    %v337 = vpop.xlane.xlu0 %336
    %vm338 = vcmp.eq.f32.partialorder %v335, %v337
    %v339 = vsel %vm338, %v334, inf
    %340 = vmin.xlane.f32.xlu0 %v339
    %v341 = vpop.xlane.xlu0 %340
    %v342 = vcvt.f32.s32 %v341
    %v343 = vcvt.f32.s32 %v337
    %v344 = vshll.u32 %v343, 16
    %v345 = vadd.s32 %v344, %v342
    %v346 = vand.u32 %v161, 65535
    %v347 = vshra.s32 %v161, 16
    %v348 = vcvt.s32.f32 %v346
    %v349 = vcvt.s32.f32 %v347
    %350 = vmin.xlane.f32.xlu0 %v349
    %v351 = vpop.xlane.xlu0 %350
    %vm352 = vcmp.eq.f32.partialorder %v349, %v351
    %v353 = vsel %vm352, %v348, inf
    %354 = vmin.xlane.f32.xlu0 %v353
    %v355 = vpop.xlane.xlu0 %354
    %v356 = vcvt.f32.s32 %v355
    %v357 = vcvt.f32.s32 %v351
    %v358 = vshll.u32 %v357, 16
    %v359 = vadd.s32 %v358, %v356
    %v360 = vand.u32 %v162, 65535
    %v361 = vshra.s32 %v162, 16
    %v362 = vcvt.s32.f32 %v360
    %v363 = vcvt.s32.f32 %v361
    %364 = vmin.xlane.f32.xlu0 %v363
    %v365 = vpop.xlane.xlu0 %364
    %vm366 = vcmp.eq.f32.partialorder %v363, %v365
    %v367 = vsel %vm366, %v362, inf
    %368 = vmin.xlane.f32.xlu0 %v367
    %v369 = vpop.xlane.xlu0 %368
    %v370 = vcvt.f32.s32 %v369
    %v371 = vcvt.f32.s32 %v365
    %v372 = vshll.u32 %v371, 16
    %v373 = vadd.s32 %v372, %v370
    %v374 = vand.u32 %v163, 65535
    %v375 = vshra.s32 %v163, 16
    %v376 = vcvt.s32.f32 %v374
    %v377 = vcvt.s32.f32 %v375
    %378 = vmin.xlane.f32.xlu0 %v377
    %v379 = vpop.xlane.xlu0 %378
    %vm380 = vcmp.eq.f32.partialorder %v377, %v379
    %v381 = vsel %vm380, %v376, inf
    %382 = vmin.xlane.f32.xlu0 %v381
    %v383 = vpop.xlane.xlu0 %382
    %v384 = vcvt.f32.s32 %v383
    %v385 = vcvt.f32.s32 %v379
    %v386 = vshll.u32 %v385, 16
    %v387 = vadd.s32 %v386, %v384
    %s388 = smul.u32 0, 128
    %v389 = vstv %s388
    %v390 = vadd.s32 %v177, %v389
    %v391 = vadd.s32 %v191, %v389
    %v392 = vadd.s32 %v205, %v389
    %v393 = vadd.s32 %v219, %v389
    %v394 = vadd.s32 %v233, %v389
    %v395 = vadd.s32 %v247, %v389
    %v396 = vadd.s32 %v261, %v389
    %v397 = vadd.s32 %v275, %v389
    %v398 = vadd.s32 %v289, %v389
    %v399 = vadd.s32 %v303, %v389
    %v400 = vadd.s32 %v317, %v389
    %v401 = vadd.s32 %v331, %v389
    %v402 = vadd.s32 %v345, %v389
    %v403 = vadd.s32 %v359, %v389
    %v404 = vadd.s32 %v373, %v389
    %v405 = vadd.s32 %v387, %v389
    %v406 = vld [vmem:[#allocation2] sm:$0xff]
    %v407 = vld [vmem:[#allocation2 + $0x8] sm:$0xff]
    %v408 = vld [vmem:[#allocation2 + $0x10] sm:$0xff]
    %v409 = vld [vmem:[#allocation2 + $0x18] sm:$0xff]
    %v410 = vld [vmem:[#allocation2 + $0x20] sm:$0xff]
    %v411 = vld [vmem:[#allocation2 + $0x28] sm:$0xff]
    %v412 = vld [vmem:[#allocation2 + $0x30] sm:$0xff]
    %v413 = vld [vmem:[#allocation2 + $0x38] sm:$0xff]
    %v414 = vld [vmem:[#allocation2 + $0x40] sm:$0xff]
    %v415 = vld [vmem:[#allocation2 + $0x48] sm:$0xff]
    %v416 = vld [vmem:[#allocation2 + $0x50] sm:$0xff]
    %v417 = vld [vmem:[#allocation2 + $0x58] sm:$0xff]
    %v418 = vld [vmem:[#allocation2 + $0x60] sm:$0xff]
    %v419 = vld [vmem:[#allocation2 + $0x68] sm:$0xff]
    %v420 = vld [vmem:[#allocation2 + $0x70] sm:$0xff]
    %v421 = vld [vmem:[#allocation2 + $0x78] sm:$0xff]
    %vm422 = vcmp.gt.f32.partialorder %v99, %v406
    %vm423 = vcmp.gt.f32.partialorder %v101, %v407
    %vm424 = vcmp.gt.f32.partialorder %v103, %v408
    %vm425 = vcmp.gt.f32.partialorder %v105, %v409
    %vm426 = vcmp.gt.f32.partialorder %v107, %v410
    %vm427 = vcmp.gt.f32.partialorder %v109, %v411
    %vm428 = vcmp.gt.f32.partialorder %v111, %v412
    %vm429 = vcmp.gt.f32.partialorder %v113, %v413
    %vm430 = vcmp.gt.f32.partialorder %v115, %v414
    %vm431 = vcmp.gt.f32.partialorder %v117, %v415
    %vm432 = vcmp.gt.f32.partialorder %v119, %v416
    %vm433 = vcmp.gt.f32.partialorder %v121, %v417
    %vm434 = vcmp.gt.f32.partialorder %v123, %v418
    %vm435 = vcmp.gt.f32.partialorder %v125, %v419
    %vm436 = vcmp.gt.f32.partialorder %v127, %v420
    %vm437 = vcmp.gt.f32.partialorder %v129, %v421
    %v438 = vsel %vm422, %v99, %v406
    %v439 = vsel %vm423, %v101, %v407
    %v440 = vsel %vm424, %v103, %v408
    %v441 = vsel %vm425, %v105, %v409
    %v442 = vsel %vm426, %v107, %v410
    %v443 = vsel %vm427, %v109, %v411
    %v444 = vsel %vm428, %v111, %v412
    %v445 = vsel %vm429, %v113, %v413
    %v446 = vsel %vm430, %v115, %v414
    %v447 = vsel %vm431, %v117, %v415
    %v448 = vsel %vm432, %v119, %v416
    %v449 = vsel %vm433, %v121, %v417
    %v450 = vsel %vm434, %v123, %v418
    %v451 = vsel %vm435, %v125, %v419
    %v452 = vsel %vm436, %v127, %v420
    %v453 = vsel %vm437, %v129, %v421
    %vm454 = vcmask 7168
    %455 = vst.msk [vmem:[#allocation2] sm:$0xff] %vm454, %v438
    %456 = vst.msk [vmem:[#allocation2 + $0x8] sm:$0xff] %vm454, %v439
    %457 = vst.msk [vmem:[#allocation2 + $0x10] sm:$0xff] %vm454, %v440
    %458 = vst.msk [vmem:[#allocation2 + $0x18] sm:$0xff] %vm454, %v441
    %459 = vst.msk [vmem:[#allocation2 + $0x20] sm:$0xff] %vm454, %v442
    %460 = vst.msk [vmem:[#allocation2 + $0x28] sm:$0xff] %vm454, %v443
    %461 = vst.msk [vmem:[#allocation2 + $0x30] sm:$0xff] %vm454, %v444
    %462 = vst.msk [vmem:[#allocation2 + $0x38] sm:$0xff] %vm454, %v445
    %463 = vst.msk [vmem:[#allocation2 + $0x40] sm:$0xff] %vm454, %v446
    %464 = vst.msk [vmem:[#allocation2 + $0x48] sm:$0xff] %vm454, %v447
    %465 = vst.msk [vmem:[#allocation2 + $0x50] sm:$0xff] %vm454, %v448
    %466 = vst.msk [vmem:[#allocation2 + $0x58] sm:$0xff] %vm454, %v449
    %467 = vst.msk [vmem:[#allocation2 + $0x60] sm:$0xff] %vm454, %v450
    %468 = vst.msk [vmem:[#allocation2 + $0x68] sm:$0xff] %vm454, %v451
    %469 = vst.msk [vmem:[#allocation2 + $0x70] sm:$0xff] %vm454, %v452
    %470 = vst.msk [vmem:[#allocation2 + $0x78] sm:$0xff] %vm454, %v453
    %v471 = vld [vmem:[#allocation3] sm:$0xff]
    %v472 = vld [vmem:[#allocation3 + $0x8] sm:$0xff]
    %v473 = vld [vmem:[#allocation3 + $0x10] sm:$0xff]
    %v474 = vld [vmem:[#allocation3 + $0x18] sm:$0xff]
    %v475 = vld [vmem:[#allocation3 + $0x20] sm:$0xff]
    %v476 = vld [vmem:[#allocation3 + $0x28] sm:$0xff]
    %v477 = vld [vmem:[#allocation3 + $0x30] sm:$0xff]
    %v478 = vld [vmem:[#allocation3 + $0x38] sm:$0xff]
    %v479 = vld [vmem:[#allocation3 + $0x40] sm:$0xff]
    %v480 = vld [vmem:[#allocation3 + $0x48] sm:$0xff]
    %v481 = vld [vmem:[#allocation3 + $0x50] sm:$0xff]
    %v482 = vld [vmem:[#allocation3 + $0x58] sm:$0xff]
    %v483 = vld [vmem:[#allocation3 + $0x60] sm:$0xff]
    %v484 = vld [vmem:[#allocation3 + $0x68] sm:$0xff]
    %v485 = vld [vmem:[#allocation3 + $0x70] sm:$0xff]
    %v486 = vld [vmem:[#allocation3 + $0x78] sm:$0xff]
    %v487 = vsel %vm422, %v390, %v471
    %v488 = vsel %vm423, %v391, %v472
    %v489 = vsel %vm424, %v392, %v473
    %v490 = vsel %vm425, %v393, %v474
    %v491 = vsel %vm426, %v394, %v475
    %v492 = vsel %vm427, %v395, %v476
    %v493 = vsel %vm428, %v396, %v477
    %v494 = vsel %vm429, %v397, %v478
    %v495 = vsel %vm430, %v398, %v479
    %v496 = vsel %vm431, %v399, %v480
    %v497 = vsel %vm432, %v400, %v481
    %v498 = vsel %vm433, %v401, %v482
    %v499 = vsel %vm434, %v402, %v483
    %v500 = vsel %vm435, %v403, %v484
    %v501 = vsel %vm436, %v404, %v485
    %v502 = vsel %vm437, %v405, %v486
    %503 = vst.msk [vmem:[#allocation3] sm:$0xff] %vm454, %v487
    %504 = vst.msk [vmem:[#allocation3 + $0x8] sm:$0xff] %vm454, %v488
    %505 = vst.msk [vmem:[#allocation3 + $0x10] sm:$0xff] %vm454, %v489
    %506 = vst.msk [vmem:[#allocation3 + $0x18] sm:$0xff] %vm454, %v490
    %507 = vst.msk [vmem:[#allocation3 + $0x20] sm:$0xff] %vm454, %v491
    %508 = vst.msk [vmem:[#allocation3 + $0x28] sm:$0xff] %vm454, %v492
    %509 = vst.msk [vmem:[#allocation3 + $0x30] sm:$0xff] %vm454, %v493
    %510 = vst.msk [vmem:[#allocation3 + $0x38] sm:$0xff] %vm454, %v494
    %511 = vst.msk [vmem:[#allocation3 + $0x40] sm:$0xff] %vm454, %v495
    %512 = vst.msk [vmem:[#allocation3 + $0x48] sm:$0xff] %vm454, %v496
    %513 = vst.msk [vmem:[#allocation3 + $0x50] sm:$0xff] %vm454, %v497
    %514 = vst.msk [vmem:[#allocation3 + $0x58] sm:$0xff] %vm454, %v498
    %515 = vst.msk [vmem:[#allocation3 + $0x60] sm:$0xff] %vm454, %v499
    %516 = vst.msk [vmem:[#allocation3 + $0x68] sm:$0xff] %vm454, %v500
    %517 = vst.msk [vmem:[#allocation3 + $0x70] sm:$0xff] %vm454, %v501
    %518 = vst.msk [vmem:[#allocation3 + $0x78] sm:$0xff] %vm454, %v502
    // Predicated region
    $region22: #{tpu_custom_call.1} parent=1 // pred_check
      %p519 = pneg %p45
    $region23: #{tpu_custom_call.1} parent=1 // pred_check_branch
      %521 = sbr.rel (%p519) target = $region25
    $region24: #{tpu_custom_call.1} parent=1 // pred_region
      %v522 = vld [vmem:[#allocation3] sm:$0xff]
      %v523 = vld [vmem:[#allocation3 + $0x8] sm:$0xff]
      %v524 = vld [vmem:[#allocation3 + $0x10] sm:$0xff]
      %v525 = vld [vmem:[#allocation3 + $0x18] sm:$0xff]
      %v526 = vld [vmem:[#allocation3 + $0x20] sm:$0xff]
      %v527 = vld [vmem:[#allocation3 + $0x28] sm:$0xff]
      %v528 = vld [vmem:[#allocation3 + $0x30] sm:$0xff]
      %v529 = vld [vmem:[#allocation3 + $0x38] sm:$0xff]
      %v530 = vld [vmem:[#allocation3 + $0x40] sm:$0xff]
      %v531 = vld [vmem:[#allocation3 + $0x48] sm:$0xff]
      %v532 = vld [vmem:[#allocation3 + $0x50] sm:$0xff]
      %v533 = vld [vmem:[#allocation3 + $0x58] sm:$0xff]
      %v534 = vld [vmem:[#allocation3 + $0x60] sm:$0xff]
      %v535 = vld [vmem:[#allocation3 + $0x68] sm:$0xff]
      %v536 = vld [vmem:[#allocation3 + $0x70] sm:$0xff]
      %v537 = vld [vmem:[#allocation3 + $0x78] sm:$0xff]
      %538 = vset.pattern.permute.xlu0 0
      %539 = vperm.xlu0 %538, %v522
      %v540 = vpop.permute.xlu0 %539
      %541 = vset.pattern.permute.xlu0 0
      %542 = vperm.xlu0 %541, %v523
      %v543 = vpop.permute.xlu0 %542
      %544 = vset.pattern.permute.xlu0 0
      %545 = vperm.xlu0 %544, %v524
      %v546 = vpop.permute.xlu0 %545
      %547 = vset.pattern.permute.xlu0 0
      %548 = vperm.xlu0 %547, %v525
      %v549 = vpop.permute.xlu0 %548
      %550 = vset.pattern.permute.xlu0 0
      %551 = vperm.xlu0 %550, %v526
      %v552 = vpop.permute.xlu0 %551
      %553 = vset.pattern.permute.xlu0 0
      %554 = vperm.xlu0 %553, %v527
      %v555 = vpop.permute.xlu0 %554
      %556 = vset.pattern.permute.xlu0 0
      %557 = vperm.xlu0 %556, %v528
      %v558 = vpop.permute.xlu0 %557
      %559 = vset.pattern.permute.xlu0 0
      %560 = vperm.xlu0 %559, %v529
      %v561 = vpop.permute.xlu0 %560
      %562 = vset.pattern.permute.xlu0 0
      %563 = vperm.xlu0 %562, %v530
      %v564 = vpop.permute.xlu0 %563
      %565 = vset.pattern.permute.xlu0 0
      %566 = vperm.xlu0 %565, %v531
      %v567 = vpop.permute.xlu0 %566
      %568 = vset.pattern.permute.xlu0 0
      %569 = vperm.xlu0 %568, %v532
      %v570 = vpop.permute.xlu0 %569
      %571 = vset.pattern.permute.xlu0 0
      %572 = vperm.xlu0 %571, %v533
      %v573 = vpop.permute.xlu0 %572
      %574 = vset.pattern.permute.xlu0 0
      %575 = vperm.xlu0 %574, %v534
      %v576 = vpop.permute.xlu0 %575
      %577 = vset.pattern.permute.xlu0 0
      %578 = vperm.xlu0 %577, %v535
      %v579 = vpop.permute.xlu0 %578
      %580 = vset.pattern.permute.xlu0 0
      %581 = vperm.xlu0 %580, %v536
      %v582 = vpop.permute.xlu0 %581
      %583 = vset.pattern.permute.xlu0 0
      %584 = vperm.xlu0 %583, %v537
      %v585 = vpop.permute.xlu0 %584
      %v586 = vperm.slane %v540, %v131
      %v587 = vadd.s32 %v131, 4294967288
      %v588 = vperm.slane %v543, %v587
      %vm589 = vcmask 130112
      %v590 = vsel %vm589, %v588, %v586
      %v591 = vadd.s32 %v131, 4294967280
      %v592 = vperm.slane %v546, %v591
      %vm593 = vcmask 195712
      %v594 = vsel %vm593, %v592, %v590
      %v595 = vadd.s32 %v131, 4294967272
      %v596 = vperm.slane %v549, %v595
      %vm597 = vcmask 261312
      %v598 = vsel %vm597, %v596, %v594
      %v599 = vadd.s32 %v131, 4294967264
      %v600 = vperm.slane %v552, %v599
      %vm601 = vcmask 326912
      %v602 = vsel %vm601, %v600, %v598
      %v603 = vadd.s32 %v131, 4294967256
      %v604 = vperm.slane %v555, %v603
      %vm605 = vcmask 392512
      %v606 = vsel %vm605, %v604, %v602
      %v607 = vadd.s32 %v131, 4294967248
      %v608 = vperm.slane %v558, %v607
      %vm609 = vcmask 458112
      %v610 = vsel %vm609, %v608, %v606
      %v611 = vadd.s32 %v131, 4294967240
      %v612 = vperm.slane %v561, %v611
      %vm613 = vcmask 523712
      %v614 = vsel %vm613, %v612, %v610
      %v615 = vadd.s32 %v131, 4294967232
      %v616 = vperm.slane %v564, %v615
      %vm617 = vcmask 589312
      %v618 = vsel %vm617, %v616, %v614
      %v619 = vadd.s32 %v131, 4294967224
      %v620 = vperm.slane %v567, %v619
      %vm621 = vcmask 654912
      %v622 = vsel %vm621, %v620, %v618
      %v623 = vadd.s32 %v131, 4294967216
      %v624 = vperm.slane %v570, %v623
      %vm625 = vcmask 720512
      %v626 = vsel %vm625, %v624, %v622
      %v627 = vadd.s32 %v131, 4294967208
      %v628 = vperm.slane %v573, %v627
      %vm629 = vcmask 786112
      %v630 = vsel %vm629, %v628, %v626
      %v631 = vadd.s32 %v131, 4294967200
      %v632 = vperm.slane %v576, %v631
      %vm633 = vcmask 851712
      %v634 = vsel %vm633, %v632, %v630
      %v635 = vadd.s32 %v131, 4294967192
      %v636 = vperm.slane %v579, %v635
      %vm637 = vcmask 917312
      %v638 = vsel %vm637, %v636, %v634
      %v639 = vadd.s32 %v131, 4294967184
      %v640 = vperm.slane %v582, %v639
      %vm641 = vcmask 982912
      %v642 = vsel %vm641, %v640, %v638
      %v643 = vadd.s32 %v131, 4294967176
      %v644 = vperm.slane %v585, %v643
      %vm645 = vcmask 1048512
      %v646 = vsel %vm645, %v644, %v642
      %647 = vst [vmem:[#allocation9] sm:$0x1] %v646
      %v648 = vld [vmem:[#allocation7] sm:$0x1]
      %v649 = vperm.slane %v648, 0
      %v650 = vlaneseq
      %v651 = vshrl.u32 %v650, 7
      %653 = vset.pattern.permute.xlu0 %v651
      %654 = vperm.xlu0 %653, %v649
      %v655 = vpop.permute.xlu0 %654
      %v656 = vlaneseq
      %v657 = vshrl.u32 %v656, 7
      %v658 = vadd.s32 %v657, 8
      %659 = vset.pattern.permute.xlu0 %v658
      %660 = vperm.xlu0 %659, %v649
      %v661 = vpop.permute.xlu0 %660
      %v662 = vlaneseq
      %v663 = vshrl.u32 %v662, 7
      %v664 = vadd.s32 %v663, 16
      %665 = vset.pattern.permute.xlu0 %v664
      %666 = vperm.xlu0 %665, %v649
      %v667 = vpop.permute.xlu0 %666
      %v668 = vlaneseq
      %v669 = vshrl.u32 %v668, 7
      %v670 = vadd.s32 %v669, 24
      %671 = vset.pattern.permute.xlu0 %v670
      %672 = vperm.xlu0 %671, %v649
      %v673 = vpop.permute.xlu0 %672
      %v674 = vlaneseq
      %v675 = vshrl.u32 %v674, 7
      %v676 = vadd.s32 %v675, 32
      %677 = vset.pattern.permute.xlu0 %v676
      %678 = vperm.xlu0 %677, %v649
      %v679 = vpop.permute.xlu0 %678
      %v680 = vlaneseq
      %v681 = vshrl.u32 %v680, 7
      %v682 = vadd.s32 %v681, 40
      %683 = vset.pattern.permute.xlu0 %v682
      %684 = vperm.xlu0 %683, %v649
      %v685 = vpop.permute.xlu0 %684
      %v686 = vlaneseq
      %v687 = vshrl.u32 %v686, 7
      %v688 = vadd.s32 %v687, 48
      %689 = vset.pattern.permute.xlu0 %v688
      %690 = vperm.xlu0 %689, %v649
      %v691 = vpop.permute.xlu0 %690
      %v692 = vlaneseq
      %v693 = vshrl.u32 %v692, 7
      %v694 = vadd.s32 %v693, 56
      %695 = vset.pattern.permute.xlu0 %v694
      %696 = vperm.xlu0 %695, %v649
      %v697 = vpop.permute.xlu0 %696
      %v698 = vlaneseq
      %v699 = vshrl.u32 %v698, 7
      %v700 = vadd.s32 %v699, 64
      %701 = vset.pattern.permute.xlu0 %v700
      %702 = vperm.xlu0 %701, %v649
      %v703 = vpop.permute.xlu0 %702
      %v704 = vlaneseq
      %v705 = vshrl.u32 %v704, 7
      %v706 = vadd.s32 %v705, 72
      %707 = vset.pattern.permute.xlu0 %v706
      %708 = vperm.xlu0 %707, %v649
      %v709 = vpop.permute.xlu0 %708
      %v710 = vlaneseq
      %v711 = vshrl.u32 %v710, 7
      %v712 = vadd.s32 %v711, 80
      %713 = vset.pattern.permute.xlu0 %v712
      %714 = vperm.xlu0 %713, %v649
      %v715 = vpop.permute.xlu0 %714
      %v716 = vlaneseq
      %v717 = vshrl.u32 %v716, 7
      %v718 = vadd.s32 %v717, 88
      %719 = vset.pattern.permute.xlu0 %v718
      %720 = vperm.xlu0 %719, %v649
      %v721 = vpop.permute.xlu0 %720
      %v722 = vlaneseq
      %v723 = vshrl.u32 %v722, 7
      %v724 = vadd.s32 %v723, 96
      %725 = vset.pattern.permute.xlu0 %v724
      %726 = vperm.xlu0 %725, %v649
      %v727 = vpop.permute.xlu0 %726
      %v728 = vlaneseq
      %v729 = vshrl.u32 %v728, 7
      %v730 = vadd.s32 %v729, 104
      %731 = vset.pattern.permute.xlu0 %v730
      %732 = vperm.xlu0 %731, %v649
      %v733 = vpop.permute.xlu0 %732
      %v734 = vlaneseq
      %v735 = vshrl.u32 %v734, 7
      %v736 = vadd.s32 %v735, 112
      %737 = vset.pattern.permute.xlu0 %v736
      %738 = vperm.xlu0 %737, %v649
      %v739 = vpop.permute.xlu0 %738
      %v740 = vlaneseq
      %v741 = vshrl.u32 %v740, 7
      %v742 = vadd.s32 %v741, 120
      %743 = vset.pattern.permute.xlu0 %v742
      %744 = vperm.xlu0 %743, %v649
      %v745 = vpop.permute.xlu0 %744
      %vm746 = vcmp.eq.s32.totalorder %v522, %v655
      %vm747 = vcmp.eq.s32.totalorder %v523, %v661
      %vm748 = vcmp.eq.s32.totalorder %v524, %v667
      %vm749 = vcmp.eq.s32.totalorder %v525, %v673
      %vm750 = vcmp.eq.s32.totalorder %v526, %v679
      %vm751 = vcmp.eq.s32.totalorder %v527, %v685
      %vm752 = vcmp.eq.s32.totalorder %v528, %v691
      %vm753 = vcmp.eq.s32.totalorder %v529, %v697
      %vm754 = vcmp.eq.s32.totalorder %v530, %v703
      %vm755 = vcmp.eq.s32.totalorder %v531, %v709
      %vm756 = vcmp.eq.s32.totalorder %v532, %v715
      %vm757 = vcmp.eq.s32.totalorder %v533, %v721
      %vm758 = vcmp.eq.s32.totalorder %v534, %v727
      %vm759 = vcmp.eq.s32.totalorder %v535, %v733
      %vm760 = vcmp.eq.s32.totalorder %v536, %v739
      %vm761 = vcmp.eq.s32.totalorder %v537, %v745
      %v762 = vsel %vm746, 1, 0
      %v763 = vsel %vm747, 1, 0
      %v764 = vsel %vm748, 1, 0
      %v765 = vsel %vm749, 1, 0
      %v766 = vsel %vm750, 1, 0
      %v767 = vsel %vm751, 1, 0
      %v768 = vsel %vm752, 1, 0
      %v769 = vsel %vm753, 1, 0
      %v770 = vsel %vm754, 1, 0
      %v771 = vsel %vm755, 1, 0
      %v772 = vsel %vm756, 1, 0
      %v773 = vsel %vm757, 1, 0
      %v774 = vsel %vm758, 1, 0
      %v775 = vsel %vm759, 1, 0
      %v776 = vsel %vm760, 1, 0
      %v777 = vsel %vm761, 1, 0
      %v778 = vcvt.s32.f32 %v762
      %v779 = vcvt.s32.f32 %v763
      %v780 = vcvt.s32.f32 %v764
      %v781 = vcvt.s32.f32 %v765
      %v782 = vcvt.s32.f32 %v766
      %v783 = vcvt.s32.f32 %v767
      %v784 = vcvt.s32.f32 %v768
      %v785 = vcvt.s32.f32 %v769
      %v786 = vcvt.s32.f32 %v770
      %v787 = vcvt.s32.f32 %v771
      %v788 = vcvt.s32.f32 %v772
      %v789 = vcvt.s32.f32 %v773
      %v790 = vcvt.s32.f32 %v774
      %v791 = vcvt.s32.f32 %v775
      %v792 = vcvt.s32.f32 %v776
      %v793 = vcvt.s32.f32 %v777
      %vm794 = vcmp.eq.s32.totalorder %v131, 0
      %811 = vset.pattern.permute.xlu0 0
      %812 = vperm.xlu0 %811, %v778
      %v813 = vpop.permute.xlu0 %812
      %814 = vset.pattern.permute.xlu0 0
      %815 = vperm.xlu0 %814, %v779
      %v816 = vpop.permute.xlu0 %815
      %817 = vset.pattern.permute.xlu0 0
      %818 = vperm.xlu0 %817, %v780
      %v819 = vpop.permute.xlu0 %818
      %820 = vset.pattern.permute.xlu0 0
      %821 = vperm.xlu0 %820, %v781
      %v822 = vpop.permute.xlu0 %821
      %823 = vset.pattern.permute.xlu0 0
      %824 = vperm.xlu0 %823, %v782
      %v825 = vpop.permute.xlu0 %824
      %826 = vset.pattern.permute.xlu0 0
      %827 = vperm.xlu0 %826, %v783
      %v828 = vpop.permute.xlu0 %827
      %829 = vset.pattern.permute.xlu0 0
      %830 = vperm.xlu0 %829, %v784
      %v831 = vpop.permute.xlu0 %830
      %832 = vset.pattern.permute.xlu0 0
      %833 = vperm.xlu0 %832, %v785
      %v834 = vpop.permute.xlu0 %833
      %835 = vset.pattern.permute.xlu0 0
      %836 = vperm.xlu0 %835, %v786
      %v837 = vpop.permute.xlu0 %836
      %838 = vset.pattern.permute.xlu0 0
      %839 = vperm.xlu0 %838, %v787
      %v840 = vpop.permute.xlu0 %839
      %841 = vset.pattern.permute.xlu0 0
      %842 = vperm.xlu0 %841, %v788
      %v843 = vpop.permute.xlu0 %842
      %844 = vset.pattern.permute.xlu0 0
      %845 = vperm.xlu0 %844, %v789
      %v846 = vpop.permute.xlu0 %845
      %847 = vset.pattern.permute.xlu0 0
      %848 = vperm.xlu0 %847, %v790
      %v849 = vpop.permute.xlu0 %848
      %850 = vset.pattern.permute.xlu0 0
      %851 = vperm.xlu0 %850, %v791
      %v852 = vpop.permute.xlu0 %851
      %853 = vset.pattern.permute.xlu0 0
      %854 = vperm.xlu0 %853, %v792
      %v855 = vpop.permute.xlu0 %854
      %856 = vset.pattern.permute.xlu0 0
      %857 = vperm.xlu0 %856, %v793
      %v858 = vpop.permute.xlu0 %857
      %v859 = vperm.slane %v813, %v131
      %v860 = vperm.slane %v816, %v587
      %v861 = vsel %vm589, %v860, %v859
      %v862 = vperm.slane %v819, %v591
      %v863 = vsel %vm593, %v862, %v861
      %v864 = vperm.slane %v822, %v595
      %v865 = vsel %vm597, %v864, %v863
      %v866 = vperm.slane %v825, %v599
      %v867 = vsel %vm601, %v866, %v865
      %v868 = vperm.slane %v828, %v603
      %v869 = vsel %vm605, %v868, %v867
      %v870 = vperm.slane %v831, %v607
      %v871 = vsel %vm609, %v870, %v869
      %v872 = vperm.slane %v834, %v611
      %v873 = vsel %vm613, %v872, %v871
      %v874 = vperm.slane %v837, %v615
      %v875 = vsel %vm617, %v874, %v873
      %v876 = vperm.slane %v840, %v619
      %v877 = vsel %vm621, %v876, %v875
      %v878 = vperm.slane %v843, %v623
      %v879 = vsel %vm625, %v878, %v877
      %v880 = vperm.slane %v846, %v627
      %v881 = vsel %vm629, %v880, %v879
      %v882 = vperm.slane %v849, %v631
      %v883 = vsel %vm633, %v882, %v881
      %v884 = vperm.slane %v852, %v635
      %v885 = vsel %vm637, %v884, %v883
      %v886 = vperm.slane %v855, %v639
      %v887 = vsel %vm641, %v886, %v885
      %v888 = vperm.slane %v858, %v643
      %v889 = vsel %vm645, %v888, %v887
      %vm891 = vcmask 1040384
      %v892 = vsel %vm891, %v889, 0.0
      %893 = vadd.xlane.f32.xlu0 %v892
      %v894 = vpop.xlane.xlu0 %893
      %v895 = vrot.slane %v894, 4
      %v896 = vadd.f32 %v894, %v895
      %v897 = vrot.slane %v896, 2
      %v898 = vadd.f32 %v896, %v897
      %v899 = vrot.slane %v898, 1
      %v900 = vadd.f32 %v898, %v899
      %s901 = vtos %v900
      %v902 = vstv %s901
      %v903 = vsel %vm794, %v902, 0.0
      %904 = vst [vmem:[#allocation10] sm:$0x1] %v903
    $region25: #{tpu_custom_call.1} parent=1 // pred_fallthru
      _
    // Predicated region
    $region26: #{tpu_custom_call.1} parent=1 // pred_check
      _
    $region27: #{tpu_custom_call.1} parent=1 // pred_check_branch
      %906 = sbr.rel (0) target = $region29
    $region28: #{tpu_custom_call.1} parent=1 // pred_region
      %908 = vsyncadd [#allocation6], 0
      %s910 = sshll.u32 [#allocation9], 4
      %s911 = int_to_ptr.vmem [resolvable:$true] %s910
      %s912 = sshll.u32 %s2, 4
      %s913 = int_to_ptr.hbm [resolvable:$true] %s912
      %915 = dma.vmem_to_hbm [thread:$0]  %s911, 16, %s913, [#allocation6]
    $region29: #{tpu_custom_call.1} parent=1 // pred_fallthru
      _
    // Predicated region
    $region30: #{tpu_custom_call.1} parent=1 // pred_check
      _
    $region31: #{tpu_custom_call.1} parent=1 // pred_check_branch
      %917 = sbr.rel (0) target = $region33
    $region32: #{tpu_custom_call.1} parent=1 // pred_region
      %919 = vsyncadd [#allocation11], 0
      %s921 = sshll.u32 [#allocation10], 4
      %s922 = int_to_ptr.vmem [resolvable:$true] %s921
      %s923 = sshll.u32 %s3, 4
      %s924 = int_to_ptr.hbm [resolvable:$true] %s923
      %926 = dma.vmem_to_hbm [thread:$0]  %s922, 16, %s924, [#allocation11]
    $region33: #{tpu_custom_call.1} parent=1 // pred_fallthru
      _
    // Predicated region
    $region34: #{tpu_custom_call.1} parent=1 // pred_check
      _
    $region35: #{tpu_custom_call.1} parent=1 // pred_check_branch
      %928 = sbr.rel (0) target = $region37
    $region36: #{tpu_custom_call.1} parent=1 // pred_region
      %930 = dma.done [#allocation6], 16
    $region37: #{tpu_custom_call.1} parent=1 // pred_fallthru
      _
    // Predicated region
    $region38: #{tpu_custom_call.1} parent=1 // pred_check
      _
    $region39: #{tpu_custom_call.1} parent=1 // pred_check_branch
      %932 = sbr.rel (0) target = $region41
    $region40: #{tpu_custom_call.1} parent=1 // pred_region
      %934 = dma.done [#allocation11], 16
    $region41: #{tpu_custom_call.1} parent=1 // pred_fallthru
      _
    %935 = vsyncpa [#allocation5], 1
    %936 = vsyncpa [#allocation8], 1
    %937 = vsyncpa [#allocation6], 1
    %938 = vsyncpa [#allocation11], 1

</llo_original>
